<compile_context>
chip_gen: v7x
topology: tpu7x:2x2x1
jax: 0.10.0
libtpu: 0.0.40
codegen_flags: <defaults>
</compile_context>

<pallas_src>
import functools

import jax
import jax.numpy as jnp
from jax.experimental import pallas as pl
from jax.experimental.pallas import tpu as pltpu


# ---------------------------------------------------------------------------
# Kernels
# ---------------------------------------------------------------------------

def _frn_fused_kernel(eps_ref, x_ref, g_ref, b_ref, o_ref):
    # eps_ref: (1,) f32 in SMEM.
    # x_ref / o_ref: (rows, HW) tile.
    # g_ref / b_ref: full (NC_pad, 1) f32 columns, VMEM-resident (constant
    #                block index); sliced per grid step below.
    rows = o_ref.shape[0]
    r0 = pl.multiple_of(pl.program_id(0) * rows, rows)
    g = g_ref[pl.ds(r0, rows), :]                        # (rows, 1) f32
    b = b_ref[pl.ds(r0, rows), :]                        # (rows, 1) f32

    x = x_ref[...]
    xf = x.astype(jnp.float32)
    nu2 = jnp.mean(xf * xf, axis=-1, keepdims=True)      # (rows, 1) f32
    inv = jax.lax.rsqrt(nu2 + jnp.abs(eps_ref[0]))       # EUP rsqrt (free slot)
    scale = g * inv                                      # fold gamma into scale

    if o_ref.dtype == jnp.float32:
        o_ref[...] = xf * scale + b
    else:
        # Apply in the native (narrow) dtype: avoids keeping a second full-tile
        # f32 copy live, which is what limits tile size on v7x's 64 MiB VMEM.
        o_ref[...] = (x * scale.astype(x.dtype) + b.astype(x.dtype)).astype(o_ref.dtype)


def _frn_sumsq_kernel(x_ref, ss_ref, *, hw_total):
    # Pass 1 of the large-HW path: accumulate sum(x^2) over HW blocks.
    # ss_ref (rows, 1) f32 has a constant block index over the HW axis, so it
    # stays VMEM-resident and acts as the accumulator (P3 pattern).
    j = pl.program_id(1)
    hw_blk = x_ref.shape[-1]
    xf = x_ref[...].astype(jnp.float32)
    if hw_total % hw_blk != 0:
        # Last HW block overhangs the array: zero the garbage lanes.
        lane = jax.lax.broadcasted_iota(jnp.int32, xf.shape, 1)
        xf = jnp.where(j * hw_blk + lane < hw_total, xf, 0.0)
    part = jnp.sum(xf * xf, axis=-1, keepdims=True)

    @pl.when(j == 0)
    def _():
        ss_ref[...] = part

    @pl.when(j > 0)
    def _():
        ss_ref[...] += part


def _frn_apply_kernel(eps_ref, x_ref, ss_ref, g_ref, b_ref, o_ref, *, hw_total):
    # Pass 2 of the large-HW path: elementwise apply of per-row scale/offset.
    nu2 = ss_ref[...] * jnp.float32(1.0 / hw_total)       # (rows, 1)
    inv = jax.lax.rsqrt(nu2 + jnp.abs(eps_ref[0]))
    scale = g_ref[...] * inv                              # (rows, 1) f32
    b = b_ref[...]                                        # (rows, 1) f32
    x = x_ref[...]
    if o_ref.dtype == jnp.float32:
        o_ref[...] = x.astype(jnp.float32) * scale + b
    else:
        o_ref[...] = (x * scale.astype(x.dtype) + b.astype(x.dtype)).astype(o_ref.dtype)


# ---------------------------------------------------------------------------
# Tiling heuristics
# ---------------------------------------------------------------------------

def _cdiv(a, b):
    return -(-a // b)


def _chip_config():
    """Generation-aware tile / VMEM settings (safe fallback if unknown)."""
    try:
        kind = jax.devices()[0].device_kind.lower()
    except Exception:
        kind = ""
    if "v5" in kind or "v6" in kind:
        # Single TensorCore per chip, 128 MiB VMEM.
        return {"target_block_bytes": 4 << 20, "vmem_limit": 64 << 20, "two_cores": False}
    if "7" in kind:
        # v7x: 2 TCs/chip, 64 MiB VMEM per TC, ~3.2 TB/s HBM per TC.
        return {"target_block_bytes": 6 << 20, "vmem_limit": 48 << 20, "two_cores": True}
    # Unknown generation: settings that are safe on every generation.
    return {"target_block_bytes": 4 << 20, "vmem_limit": 48 << 20, "two_cores": True}


def _max_rows_for_vmem(hw, itemsize, vmem_limit):
    """Largest row count whose double-buffered in+out tile (+ f32 temps) fits."""
    per_row = 4 * hw * itemsize + 2 * hw * 4    # 2x dbuf in + 2x dbuf out + temps
    budget = int(vmem_limit * 0.9)
    return budget // max(1, per_row)


def _pick_fused_rows(nc, hw, itemsize, cfg):
    """Rows per tile for the single-pass path, or None if HW must be split."""
    vmem_rows = _max_rows_for_vmem(hw, itemsize, cfg["vmem_limit"])
    min_rows = nc if nc <= 8 else 8
    if vmem_rows < min_rows:
        return None                                    # even 8 rows blow VMEM
    if nc <= 8:
        return nc                                      # block dim == full dim
    row_bytes = hw * itemsize
    rows = (cfg["target_block_bytes"] // max(1, row_bytes)) // 8 * 8
    rows = max(8, min(rows, (vmem_rows // 8) * 8, _cdiv(nc, 8) * 8))
    if cfg["two_cores"]:
        # Prefer an even number of grid steps so the single "parallel" axis
        # shards evenly over both TensorCores; never drop below 8 rows/tile.
        steps = _cdiv(nc, rows)
        if steps < 8 and steps % 2 == 1:
            cand = rows
            while cand > 8 and (_cdiv(nc, cand) % 2 == 1 or _cdiv(nc, cand) < 2):
                cand -= 8
            if _cdiv(nc, cand) % 2 == 0:
                rows = cand
    return rows


def _pick_split_hw_block(nc, hw, itemsize, cfg):
    """Tile shape for the two-pass (HW-split) path."""
    rows = nc if nc < 8 else 8
    per_col = 4 * rows * itemsize + 2 * rows * 4
    vmem_cols = int(cfg["vmem_limit"] * 0.9) // max(1, per_col)
    target_cols = cfg["target_block_bytes"] // max(1, rows * itemsize)
    hw_blk = (min(vmem_cols, target_cols) // 128) * 128
    hw_blk = max(128, min(hw_blk, _cdiv(hw, 128) * 128))
    return rows, hw_blk


# ---------------------------------------------------------------------------
# Wrapper
# ---------------------------------------------------------------------------

def filter_response_norm_2d(x, gamma, beta, eps, *, force_split=False, max_hw_block=None):
    """FRN forward.  x: (N, C, H, W); gamma, beta: (1, C, 1, 1); eps: (1,)."""
    N, C, H, W = x.shape
    NC, HW = N * C, H * W
    cfg = _chip_config()
    itemsize = jnp.dtype(x.dtype).itemsize

    x2d = x.reshape(NC, HW)
    eps1 = eps.reshape(1).astype(jnp.float32)            # (1,) SMEM scalar

    # Per-row (per (n, c)) gamma/beta as skinny f32 columns.
    g_col = jnp.broadcast_to(gamma.reshape(1, C), (N, C)).reshape(NC, 1).astype(jnp.float32)
    b_col = jnp.broadcast_to(beta.reshape(1, C), (N, C)).reshape(NC, 1).astype(jnp.float32)

    rows = None if force_split else _pick_fused_rows(NC, HW, itemsize, cfg)

    if rows is not None:
        # ---------------- single-pass path (HW fits one lane-dense tile) ----
        grid = (_cdiv(NC, rows),)
        nc_pad = grid[0] * rows
        if nc_pad != NC:
            # Pad so the in-kernel pl.ds slice on the VMEM-resident gamma/beta
            # columns stays in bounds on the (masked) tail block.
            g_col = jnp.pad(g_col, ((0, nc_pad - NC), (0, 0)))
            b_col = jnp.pad(b_col, ((0, nc_pad - NC), (0, 0)))
        out2d = pl.pallas_call(
            _frn_fused_kernel,
            out_shape=jax.ShapeDtypeStruct((NC, HW), x.dtype),
            grid_spec=pltpu.PrefetchScalarGridSpec(
                num_scalar_prefetch=0,
                grid=grid,
                in_specs=[
                    pl.BlockSpec(memory_space=pltpu.MemorySpace.SMEM),   # eps
                    pl.BlockSpec((rows, HW), lambda i: (i, 0)),          # x tile
                    pl.BlockSpec((nc_pad, 1), lambda i: (0, 0)),         # gamma (resident)
                    pl.BlockSpec((nc_pad, 1), lambda i: (0, 0)),         # beta  (resident)
                ],
                out_specs=pl.BlockSpec((rows, HW), lambda i: (i, 0)),
            ),
            compiler_params=pltpu.CompilerParams(
                dimension_semantics=("parallel",),
                vmem_limit_bytes=cfg["vmem_limit"],
            ),
        )(eps1, x2d, g_col, b_col)
        return out2d.reshape(N, C, H, W)

    # ---------------- two-pass path: HW split across an "arbitrary" axis ----
    rows, hw_blk = _pick_split_hw_block(NC, HW, itemsize, cfg)
    if max_hw_block is not None:
        hw_blk = max(128, min(hw_blk, (max_hw_block // 128) * 128))
    grid2 = (_cdiv(NC, rows), _cdiv(HW, hw_blk))
    params2 = pltpu.CompilerParams(
        dimension_semantics=("parallel", "arbitrary"),
        vmem_limit_bytes=cfg["vmem_limit"],
    )

    sumsq = pl.pallas_call(
        functools.partial(_frn_sumsq_kernel, hw_total=HW),
        out_shape=jax.ShapeDtypeStruct((NC, 1), jnp.float32),
        grid_spec=pltpu.PrefetchScalarGridSpec(
            num_scalar_prefetch=0,
            grid=grid2,
            in_specs=[pl.BlockSpec((rows, hw_blk), lambda i, j: (i, j))],
            out_specs=pl.BlockSpec((rows, 1), lambda i, j: (i, 0)),
        ),
        compiler_params=params2,
    )(x2d)

    out2d = pl.pallas_call(
        functools.partial(_frn_apply_kernel, hw_total=HW),
        out_shape=jax.ShapeDtypeStruct((NC, HW), x.dtype),
        grid_spec=pltpu.PrefetchScalarGridSpec(
            num_scalar_prefetch=0,
            grid=grid2,
            in_specs=[
                pl.BlockSpec(memory_space=pltpu.MemorySpace.SMEM),       # eps
                pl.BlockSpec((rows, hw_blk), lambda i, j: (i, j)),       # x tile
                pl.BlockSpec((rows, 1), lambda i, j: (i, 0)),            # sum(x^2)
                pl.BlockSpec((rows, 1), lambda i, j: (i, 0)),            # gamma
                pl.BlockSpec((rows, 1), lambda i, j: (i, 0)),            # beta
            ],
            out_specs=pl.BlockSpec((rows, hw_blk), lambda i, j: (i, j)),
        ),
        compiler_params=params2,
    )(eps1, x2d, sumsq, g_col, b_col)
    return out2d.reshape(N, C, H, W)


# ---------------------------------------------------------------------------
# Reference + test
# ---------------------------------------------------------------------------

def frn_reference(x, gamma, beta, eps):
    nu2 = jnp.mean(x.astype(jnp.float32) ** 2, axis=(2, 3), keepdims=True)
    xn = x * jax.lax.rsqrt(nu2 + jnp.abs(eps)[0])
    return gamma * xn + beta


if __name__ == "__main__":
    key = jax.random.PRNGKey(0)

    # Deterministic parameter init (matches torch module __init__):
    # beta = zeros(1,C,1,1); gamma = ones(1,C,1,1); eps = ones(1) * 1e-6
    def make_params(C):
        beta = jnp.zeros((1, C, 1, 1), dtype=jnp.float32)
        gamma = jnp.ones((1, C, 1, 1), dtype=jnp.float32)
        eps = jnp.ones((1,), dtype=jnp.float32) * 1e-6
        return gamma, beta, eps

    # 1) Single-pass (fused) path.
    N, C, H, W = 2, 4, 16, 16
    k1, k2 = jax.random.split(key)
    x = jax.random.normal(k1, (N, C, H, W), dtype=jnp.float32)
    gamma, beta, eps = make_params(C)
    out = jax.block_until_ready(filter_response_norm_2d(x, gamma, beta, eps))
    ref = frn_reference(x, gamma, beta, eps)
    assert out.shape == (N, C, H, W)
    assert jnp.allclose(out, ref, atol=1e-5, rtol=1e-5), "fused path mismatch"

    # 2) Two-pass (HW-split) path, forced at a small shape with HW % block == 0.
    out2 = jax.block_until_ready(
        filter_response_norm_2d(x, gamma, beta, eps, force_split=True, max_hw_block=128))
    assert jnp.allclose(out2, ref, atol=1e-5, rtol=1e-5), "split path mismatch"

    # 3) Two-pass path with HW not a multiple of the HW block (masked tail).
    N3, C3, H3, W3 = 2, 4, 12, 12
    x3 = jax.random.normal(k2, (N3, C3, H3, W3), dtype=jnp.float32)
    gamma3, beta3, eps3 = make_params(C3)
    out3 = jax.block_until_ready(
        filter_response_norm_2d(x3, gamma3, beta3, eps3, force_split=True, max_hw_block=128))
    ref3 = frn_reference(x3, gamma3, beta3, eps3)
    assert jnp.allclose(out3, ref3, atol=1e-5, rtol=1e-5), "split tail path mismatch"

    print("KERNEL_OK")
</pallas_src>

<mosaic_0001>
module attributes {stable_mosaic.version = 11 : i64} {
  func.func @_frn_fused_kernel(%arg0: i32, %arg1: memref<1xf32, #tpu.memory_space<smem>>, %arg2: memref<8x256xf32, #tpu.memory_space<vmem>>, %arg3: memref<8x1xf32, #tpu.memory_space<vmem>>, %arg4: memref<8x1xf32, #tpu.memory_space<vmem>>, %arg5: memref<8x256xf32, #tpu.memory_space<vmem>>) attributes {dimension_semantics = [#tpu.dimension_semantics<parallel>], iteration_bounds = array<i64: 1>, scalar_prefetch = 0 : i64, scratch_operands = 0 : i64, tpu.core_type = #tpu.core_type<tc>, window_params = [{transform_indices = @transform_0, window_bounds = array<i64: 1>}, {transform_indices = @transform_1, window_bounds = array<i64: 8, 256>}, {pipeline_mode = #tpu.pipeline_mode<synchronous>, transform_indices = @transform_2, window_bounds = array<i64: 8, 1>}, {pipeline_mode = #tpu.pipeline_mode<synchronous>, transform_indices = @transform_3, window_bounds = array<i64: 8, 1>}, {transform_indices = @transform_4, window_bounds = array<i64: 8, 256>}]} {
    %c8_i32 = arith.constant 8 : i32
    %0 = arith.muli %arg0, %c8_i32 : i32
    %1 = tpu.assume_multiple %0, 8 : i32
    %2 = arith.index_cast %1 : i32 to index
    %c0 = arith.constant 0 : index
    %3 = vector.load %arg3[%2, %c0] : memref<8x1xf32, #tpu.memory_space<vmem>>, vector<8x1xf32>
    %4 = arith.index_cast %1 : i32 to index
    %c0_0 = arith.constant 0 : index
    %5 = vector.load %arg4[%4, %c0_0] : memref<8x1xf32, #tpu.memory_space<vmem>>, vector<8x1xf32>
    %c0_1 = arith.constant 0 : index
    %c0_2 = arith.constant 0 : index
    %6 = vector.load %arg2[%c0_1, %c0_2] : memref<8x256xf32, #tpu.memory_space<vmem>>, vector<8x256xf32>
    %7 = arith.mulf %6, %6 : vector<8x256xf32>
    %cst = arith.constant dense<0.000000e+00> : vector<8xf32>
    %8 = vector.multi_reduction <add>, %7, %cst [1] : vector<8x256xf32> to vector<8xf32>
    %9 = vector.shape_cast %8 : vector<8xf32> to vector<8x1xf32>
    %cst_3 = arith.constant 2.560000e+02 : f32
    %10 = vector.broadcast %cst_3 : f32 to vector<8x1xf32>
    %11 = arith.divf %9, %10 : vector<8x1xf32>
    %c0_4 = arith.constant 0 : index
    %12 = memref.load %arg1[%c0_4] : memref<1xf32, #tpu.memory_space<smem>>
    %13 = math.absf %12 : f32
    %14 = vector.broadcast %13 : f32 to vector<8x1xf32>
    %15 = arith.addf %11, %14 : vector<8x1xf32>
    %16 = math.rsqrt %15 : vector<8x1xf32>
    %17 = arith.mulf %3, %16 : vector<8x1xf32>
    %18 = vector.broadcast %17 : vector<8x1xf32> to vector<8x256xf32>
    %19 = arith.mulf %6, %18 : vector<8x256xf32>
    %20 = vector.broadcast %5 : vector<8x1xf32> to vector<8x256xf32>
    %21 = arith.addf %19, %20 : vector<8x256xf32>
    %c0_5 = arith.constant 0 : index
    %c0_6 = arith.constant 0 : index
    %22 = vector.load %arg5[%c0_5, %c0_6] : memref<8x256xf32, #tpu.memory_space<vmem>>, vector<8x256xf32>
    tpu.vector_store %arg5[%c0_5, %c0_6], %21 {strides = array<i32>} : memref<8x256xf32, #tpu.memory_space<vmem>>, vector<8x256xf32>,
    return
  }
  func.func @transform_0(%arg0: i32) -> i32 {
    %c0_i32 = arith.constant 0 : i32
    %c0_i32_0 = arith.constant 0 : i32
    return %c0_i32 : i32
  }
  func.func @transform_1(%arg0: i32) -> (i32, i32) {
    %c0_i32 = arith.constant 0 : i32
    %c0_i32_0 = arith.constant 0 : i32
    return %arg0, %c0_i32 : i32, i32
  }
  func.func @transform_2(%arg0: i32) -> (i32, i32) {
    %c0_i32 = arith.constant 0 : i32
    %c0_i32_0 = arith.constant 0 : i32
    %c0_i32_1 = arith.constant 0 : i32
    return %c0_i32, %c0_i32_0 : i32, i32
  }
  func.func @transform_3(%arg0: i32) -> (i32, i32) {
    %c0_i32 = arith.constant 0 : i32
    %c0_i32_0 = arith.constant 0 : i32
    %c0_i32_1 = arith.constant 0 : i32
    return %c0_i32, %c0_i32_0 : i32, i32
  }
  func.func @transform_4(%arg0: i32) -> (i32, i32) {
    %c0_i32 = arith.constant 0 : i32
    %c0_i32_0 = arith.constant 0 : i32
    return %arg0, %c0_i32 : i32, i32
  }
}

</mosaic_0001>

<llo_original>
// kernel: tpu_custom_call.1
$region0: #{tpu_custom_call.1}
  #allocation0 [shape = 'u32[]', space=smem, size = 0x4, offset = 0x4, fixed_abs, tag = 'smem constant byte address 0x4 - core index']
  #allocation1 [shape = 'u32[144,128]{1,0:T(1,128)}', space=vmem, size = 0x12000, scoped, tag = 'internal scratch']
  #allocation2 [shape = 'f32[1]{0:T(128)S(6)}', space=smem, size = 0x200, scoped, tag = 'scoped memory for tpu_custom_call.1']
  %s0 = inlined_call_operand.<no memory space> [shape: f32[1], index: 0, kind: input, shape index: {}]
  %s1 = inlined_call_operand.vmem [shape: f32[8,256], index: 1, kind: input, shape index: {}]
  %s2 = inlined_call_operand.vmem [shape: f32[8,1], index: 2, kind: input, shape index: {}]
  %s3 = inlined_call_operand.vmem [shape: f32[8,1], index: 3, kind: input, shape index: {}]
  %s4 = inlined_call_operand.hbm [shape: f32[8,256], index: 4, kind: output, shape index: {}]
  %s5 = sld [smem:[#allocation0]]
  $region26: #{tpu_custom_call.1} parent=0
    _
  %s7 = ssub.s32 1, %s5
  %s8 = scalar_select 0, %s7, %s5
  %9 = sst [smem:[#allocation2]] %s0
  $region1: #{tpu_custom_call.1} parent=0
    #allocation3 [shape = 'u8[8192]{0}', space=vmem, size = 0x2000, scoped, tag = 'output window, operand 0, single buffered']
    #allocation4 [shape = 's32[1]{0}', space=sflag, size = 0x4, scoped, tag = 'scoped memory for tpu_custom_call.1']
    %10 = vsyncpa [#allocation4], 0
    // Predicated region
    $region2: #{tpu_custom_call.1} parent=1 // pred_check
      _
    $region3: #{tpu_custom_call.1} parent=1 // pred_check_branch
      %12 = sbr.rel (0) target = $region5
    $region4: #{tpu_custom_call.1} parent=1 // pred_region
      _
    $region5: #{tpu_custom_call.1} parent=1 // pred_fallthru
      _
    // Predicated region
    $region6: #{tpu_custom_call.1} parent=1 // pred_check
      _
    $region7: #{tpu_custom_call.1} parent=1 // pred_check_branch
      %14 = sbr.rel (0) target = $region9
    $region8: #{tpu_custom_call.1} parent=1 // pred_region
      _
    $region9: #{tpu_custom_call.1} parent=1 // pred_fallthru
      _
    // Predicated region
    $region10: #{tpu_custom_call.1} parent=1 // pred_check
      _
    $region11: #{tpu_custom_call.1} parent=1 // pred_check_branch
      %16 = sbr.rel (0) target = $region13
    $region12: #{tpu_custom_call.1} parent=1 // pred_region
      _
    $region13: #{tpu_custom_call.1} parent=1 // pred_fallthru
      _
    // Predicated region
    $region14: #{tpu_custom_call.1} parent=1 // pred_check
      _
    $region15: #{tpu_custom_call.1} parent=1 // pred_check_branch
      %18 = sbr.rel (0) target = $region17
    $region16: #{tpu_custom_call.1} parent=1 // pred_region
      _
    $region17: #{tpu_custom_call.1} parent=1 // pred_fallthru
      _
    %s19 = smul.u32 0, 8
    %s20 = scalar_lea.vmem %s2, %s19
    %v21 = vld [vmem:[%s20] sm:$0xff]
    %s22 = scalar_lea.vmem %s3, %s19
    %v23 = vld [vmem:[%s22] sm:$0xff]
    %v24 = vld [vmem:[%s1] sm:$0xff]
    %v25 = vld [vmem:[%s1 + $0x8] sm:$0xff]
    %v26 = vmul.f32 %v24, %v24
    %v27 = vmul.f32 %v25, %v25
    %v28 = vadd.f32 %v26, %v27
    %29 = vadd.xlane.f32.xlu0 %v28
    %v30 = vpop.xlane.xlu0 %29
    %v31 = vrcp.pop 256.0
    %v32 = vmul.f32 %v30, %v31
    %s33 = sld [smem:[#allocation2]]
    %s34 = sand.u32 2147483647, %s33
    %v35 = vstv %s34
    %v36 = vadd.f32 %v32, %v35
    %v37 = vrsqrt.pop %v36
    %v38 = vmul.f32 %v21, %v37
    %40 = vset.pattern.permute.xlu0 0
    %41 = vperm.xlu0 %40, %v38
    %v42 = vpop.permute.xlu0 %41
    %v44 = vmul.f32 %v24, %v42
    %v45 = vmul.f32 %v25, %v42
    %47 = vset.pattern.permute.xlu0 0
    %48 = vperm.xlu0 %47, %v23
    %v49 = vpop.permute.xlu0 %48
    %v51 = vadd.f32 %v44, %v49
    %v52 = vadd.f32 %v45, %v49
    %53 = vst [vmem:[#allocation3] sm:$0xff] %v51
    %54 = vst [vmem:[#allocation3 + $0x8] sm:$0xff] %v52
    // Predicated region
    $region18: #{tpu_custom_call.1} parent=1 // pred_check
      _
    $region19: #{tpu_custom_call.1} parent=1 // pred_check_branch
      %56 = sbr.rel (0) target = $region21
    $region20: #{tpu_custom_call.1} parent=1 // pred_region
      %s58 = ssub.s32 256, 256
      %59 = vsyncadd [#allocation4], %s58
      %s61 = sshll.u32 [#allocation3], 4
      %s62 = int_to_ptr.vmem [resolvable:$true] %s61
      %64 = dma.vmem_to_hbm [thread:$0]  %s62, 256, %s4, [#allocation4]
    $region21: #{tpu_custom_call.1} parent=1 // pred_fallthru
      _
    // Predicated region
    $region22: #{tpu_custom_call.1} parent=1 // pred_check
      _
    $region23: #{tpu_custom_call.1} parent=1 // pred_check_branch
      %66 = sbr.rel (0) target = $region25
    $region24: #{tpu_custom_call.1} parent=1 // pred_region
      %67 = dma.done [#allocation4], 256
    $region25: #{tpu_custom_call.1} parent=1 // pred_fallthru
      _
    %68 = vsyncpa [#allocation4], 1

</llo_original>
